<compile_context>
chip_gen: v5e
topology: v5e:2x2
jax: 0.10.0
libtpu: 0.0.40
codegen_flags: <defaults>
</compile_context>

<pallas_src>
import functools

import numpy as np
import jax
import jax.numpy as jnp
from jax.experimental import pallas as pl
from jax.experimental.pallas import tpu as pltpu


# ---------------------------------------------------------------------------
# Kernel 1: fused conv1(1x1)+BN+ReLU -> conv2(1x1)+BN+ReLU on (C, H*W) tiles.
# Grid over batch, marked "parallel" so v7x megacore splits the two rows.
# ---------------------------------------------------------------------------
def _conv_pair_kernel(x_ref, w1_ref, b1_ref, w2_ref, b2_ref, o_ref):
    x = x_ref[...]                                            # (Cin, HW) f32
    y = jnp.dot(w1_ref[...], x, preferred_element_type=jnp.float32) + b1_ref[...]
    y = jnp.maximum(y, 0.0)
    y = jnp.dot(w2_ref[...], y, preferred_element_type=jnp.float32) + b2_ref[...]
    y = jnp.maximum(y, 0.0)
    o_ref[...] = y.astype(o_ref.dtype)


def conv_pair(x, w1, b1, w2, b2):
    """x:(B,C,HW) f32. w:(Cout,Cin) BN-folded. b:(Cout,1) BN-folded bias."""
    B, C, HW = x.shape
    C1 = w1.shape[0]
    C2 = w2.shape[0]
    return pl.pallas_call(
        _conv_pair_kernel,
        out_shape=jax.ShapeDtypeStruct((B, C2, HW), jnp.float32),
        grid_spec=pltpu.PrefetchScalarGridSpec(
            num_scalar_prefetch=0,
            grid=(B,),
            in_specs=[
                pl.BlockSpec((None, C, HW), lambda b: (b, 0, 0)),
                pl.BlockSpec((C1, C), lambda b: (0, 0)),
                pl.BlockSpec((C1, 1), lambda b: (0, 0)),
                pl.BlockSpec((C2, C1), lambda b: (0, 0)),
                pl.BlockSpec((C2, 1), lambda b: (0, 0)),
            ],
            out_specs=pl.BlockSpec((None, C2, HW), lambda b: (b, 0, 0)),
        ),
        compiler_params=pltpu.CompilerParams(dimension_semantics=("parallel",)),
    )(x, w1, b1, w2, b2)


# ---------------------------------------------------------------------------
# Kernel 2: out = act( x @ w + shift )  with BN pre-folded into w/shift.
# 2-D grid: N tiles "parallel" (megacore splits the weight stream on v7x),
# K tiles "arbitrary" (innermost, resident f32 accumulator).
# Weights may be bf16 (HBM-bandwidth bound GEMV); accumulation stays f32.
# ---------------------------------------------------------------------------
def _fused_linear_kernel(x_ref, w_ref, s_ref, o_ref, acc_ref, *, act):
    k = pl.program_id(1)

    @pl.when(k == 0)
    def _():
        acc_ref[...] = jnp.zeros_like(acc_ref)

    x = x_ref[...]
    w = w_ref[...]
    if w.dtype == jnp.bfloat16:
        x = x.astype(jnp.bfloat16)                     # MXU-native, f32 accumulate
    acc_ref[...] += jnp.dot(x, w, preferred_element_type=jnp.float32)

    @pl.when(k == pl.num_programs(1) - 1)
    def _():
        z = acc_ref[...] + s_ref[...]
        if act == "relu":
            z = jnp.maximum(z, 0.0)
        elif act == "lrelu":                           # PyTorch LeakyReLU default
            z = jnp.where(z > 0.0, z, 0.01 * z)
        o_ref[...] = z.astype(o_ref.dtype)


def fused_linear(x, w, shift, *, act="none", tn=None, tk=None,
                 vmem_limit_bytes=None):
    M, K = x.shape
    _, N = w.shape
    tn = N if tn is None else tn
    tk = K if tk is None else tk
    assert K % tk == 0 and N % tn == 0
    s2 = shift.reshape(1, N).astype(jnp.float32)
    kernel = functools.partial(_fused_linear_kernel, act=act)
    return pl.pallas_call(
        kernel,
        out_shape=jax.ShapeDtypeStruct((M, N), jnp.float32),
        grid_spec=pltpu.PrefetchScalarGridSpec(
            num_scalar_prefetch=0,
            grid=(N // tn, K // tk),                   # K innermost: acc resident
            in_specs=[
                pl.BlockSpec((M, tk), lambda n, k: (0, k)),
                pl.BlockSpec((tk, tn), lambda n, k: (k, n)),
                pl.BlockSpec((1, tn), lambda n, k: (0, n)),
            ],
            out_specs=pl.BlockSpec((M, tn), lambda n, k: (0, n)),
            scratch_shapes=[pltpu.VMEM((M, tn), jnp.float32)],
        ),
        compiler_params=pltpu.CompilerParams(
            dimension_semantics=("parallel", "arbitrary"),
            vmem_limit_bytes=vmem_limit_bytes),
    )(x, w, s2)


# ---------------------------------------------------------------------------
# Kernel 3: fused tail
#   layer1(+folded BN)+ReLU -> merge_hidden+LeakyReLU -> sigmoid (stand-in for
#   compute_ruleset_vector) -> AND stage (weighted_exponential_mean, rho=-14,
#   clamp[0,1]) -> OR stage (`minmax` with softmax(ones)=uniform weights).
# Ragged group means are encoded as matmuls with membership matrices
# w_and (T,R) and w_or (R,C). Everything in one pallas_call (weights ~1 MB).
# ---------------------------------------------------------------------------
def _tail_kernel(x_ref, w1_ref, s1_ref, w2_ref, b2_ref, wand_ref, wor_ref,
                 o_ref, *, rho):
    x = x_ref[...]
    w1 = w1_ref[...]
    if w1.dtype == jnp.bfloat16:
        x = x.astype(jnp.bfloat16)
    h = jnp.dot(x, w1, preferred_element_type=jnp.float32) + s1_ref[...]
    h = jnp.maximum(h, 0.0)
    o2 = jnp.dot(h, w2_ref[...], preferred_element_type=jnp.float32) + b2_ref[...]
    o2 = jnp.where(o2 > 0.0, o2, 0.01 * o2)
    # TODO(synk): weirules_inst.compute_ruleset_vector is external to the
    # module (not provided); deterministic sigmoid stand-in maps the learned
    # slopes to per-comparison truth values in [0, 1].
    r = 1.0 / (1.0 + jnp.exp(-o2))
    e1 = jnp.exp(-rho * r)
    anded = jnp.dot(e1, wand_ref[...], preferred_element_type=jnp.float32)
    anded = jnp.clip((-1.0 / rho) * jnp.log(anded + 1e-8), 0.0, 1.0)
    e2 = jnp.exp(rho * anded)
    orred = jnp.dot(e2, wor_ref[...], preferred_element_type=jnp.float32)
    o_ref[...] = ((1.0 / rho) * jnp.log(orred + 1e-8)).astype(o_ref.dtype)


def tail_fused(x, w_l1, shift_l1, w_mh, b_mh, w_and, w_or, rho=14.0):
    B = x.shape[0]
    C = w_or.shape[1]
    s1 = shift_l1.reshape(1, -1).astype(jnp.float32)
    b2 = b_mh.reshape(1, -1).astype(jnp.float32)
    args = (x, w_l1, s1, w_mh.astype(jnp.float32), b2,
            w_and.astype(jnp.float32), w_or.astype(jnp.float32))

    def full_spec(a):
        nd = a.ndim
        return pl.BlockSpec(a.shape, lambda i, _nd=nd: (0,) * _nd)

    kernel = functools.partial(_tail_kernel, rho=float(rho))
    return pl.pallas_call(
        kernel,
        out_shape=jax.ShapeDtypeStruct((B, C), jnp.float32),
        grid=(1,),
        in_specs=[full_spec(a) for a in args],
        out_specs=pl.BlockSpec((B, C), lambda i: (0, 0)),
    )(*args)


# ---------------------------------------------------------------------------
# Network configuration / deterministic parameter init & BN folding.
# ---------------------------------------------------------------------------
CLASSES = ("class_a", "class_b", "class_c")
RULESET_LENS = {"class_a": [3, 2], "class_b": [2, 4], "class_c": [3]}


def build_rule_matrices():
    lens = [n for c in CLASSES for n in RULESET_LENS[c]]
    T, R = sum(lens), len(lens)
    w_and = np.zeros((T, R), np.float32)
    t0 = 0
    for r, n in enumerate(lens):
        w_and[t0:t0 + n, r] = 1.0 / n                 # 1/N weighted exp mean
        t0 += n
    w_or = np.zeros((R, len(CLASSES)), np.float32)
    r0 = 0
    for c, cname in enumerate(CLASSES):
        m = len(RULESET_LENS[cname])
        w_or[r0:r0 + m, c] = 1.0 / m                  # softmax(ones) == 1/M
        r0 += m
    return jnp.asarray(w_and), jnp.asarray(w_or), T


def init_params(key, slopes_len):
    keys = jax.random.split(key, 8)

    def dense(k, fan_in, fan_out):
        kw, kb = jax.random.split(k)
        bound = 1.0 / np.sqrt(fan_in)
        w = jax.random.uniform(kw, (fan_in, fan_out), minval=-bound,
                               maxval=bound, dtype=jnp.float32)
        b = jax.random.uniform(kb, (fan_out,), minval=-bound,
                               maxval=bound, dtype=jnp.float32)
        return w, b

    def bn_fold(n):
        # Fresh BatchNorm in eval mode: gamma=1, beta=0, mean=0, var=1, eps=1e-5.
        gamma, beta = jnp.ones((n,), jnp.float32), jnp.zeros((n,), jnp.float32)
        mean, var = jnp.zeros((n,), jnp.float32), jnp.ones((n,), jnp.float32)
        scale = gamma / jnp.sqrt(var + 1e-5)
        shift = beta - mean * scale
        return scale, shift

    p = {}
    p["conv1_w"], p["conv1_b"] = dense(keys[0], 256, 256)     # (Cin, Cout)
    p["bn2d1_scale"], p["bn2d1_shift"] = bn_fold(256)
    p["conv2_w"], p["conv2_b"] = dense(keys[1], 256, 256)
    p["bn2d2_scale"], p["bn2d2_shift"] = bn_fold(256)
    p["c1_w"], p["c1_b"] = dense(keys[2], 12544, 1024)
    p["bn1d_c1_scale"], p["bn1d_c1_shift"] = bn_fold(1024)
    p["l1_w"], p["l1_b"] = dense(keys[3], 1024, 512)
    p["bn1d_4_scale"], p["bn1d_4_shift"] = bn_fold(512)
    p["mh_w"], p["mh_b"] = dense(keys[4], 512, slopes_len)
    p["w_and"], p["w_or"], _ = build_rule_matrices()
    return p


def fold_params(raw):
    """Fold eval-mode BatchNorm into weights/bias; cast big weights to bf16."""
    p = {}
    for i in (1, 2):
        w, b = raw[f"conv{i}_w"], raw[f"conv{i}_b"]           # (Cin,Cout), (Cout,)
        sc, sh = raw[f"bn2d{i}_scale"], raw[f"bn2d{i}_shift"]
        p[f"conv{i}_wf"] = (w.T * sc[:, None]).astype(jnp.float32)   # (Cout,Cin)
        p[f"conv{i}_bf"] = ((b * sc + sh)[:, None]).astype(jnp.float32)
    p["c1_wf"] = (raw["c1_w"] * raw["bn1d_c1_scale"][None, :]).astype(jnp.bfloat16)
    p["c1_shift"] = raw["c1_b"] * raw["bn1d_c1_scale"] + raw["bn1d_c1_shift"]
    p["l1_wf"] = (raw["l1_w"] * raw["bn1d_4_scale"][None, :]).astype(jnp.bfloat16)
    p["l1_shift"] = raw["l1_b"] * raw["bn1d_4_scale"] + raw["bn1d_4_shift"]
    p["mh_w"], p["mh_b"] = raw["mh_w"], raw["mh_b"]
    p["w_and"], p["w_or"] = raw["w_and"], raw["w_or"]
    return p


# ---------------------------------------------------------------------------
# Forward pass: 3 pallas_calls, only free (contiguous) reshapes in between.
# ---------------------------------------------------------------------------
def network_forward(p, deep_input, rho=14.0):
    B, C, H, W = deep_input.shape                             # NCHW, C=256, H=W=7
    x = deep_input.reshape(B, C, H * W).astype(jnp.float32)   # free reshape
    cx = conv_pair(x, p["conv1_wf"], p["conv1_bf"], p["conv2_wf"], p["conv2_bf"])
    # row-major (B, C, HW) flatten == PyTorch flatten(start_dim=1) (C*H*W order)
    cx = cx.reshape(B, C * H * W)                             # (B, 12544), free
    # 12544 = 2*6272; 4 pipeline steps total (2 per TensorCore on v7x).
    # Double-buffered bf16 weight block: 6272*512*2 B = 6.125 MiB * 2 = 12.25 MiB.
    cx = fused_linear(cx, p["c1_wf"], p["c1_shift"], act="relu",
                      tn=512, tk=6272, vmem_limit_bytes=32 * 1024 * 1024)
    return tail_fused(cx, p["l1_wf"], p["l1_shift"], p["mh_w"], p["mh_b"],
                      p["w_and"], p["w_or"], rho=rho)


if __name__ == "__main__":
    key = jax.random.PRNGKey(0)
    k_in, k_par = jax.random.split(key)

    _, _, slopes_len = build_rule_matrices()                  # slopes_len = 14
    raw_params = init_params(k_par, slopes_len)
    params = fold_params(raw_params)

    # conv1 expects 256 channels; c_hidden_1 expects 12544 = 256*7*7 -> 7x7.
    deep_input = jax.random.normal(k_in, (2, 256, 7, 7), dtype=jnp.float32)

    out = network_forward(params, deep_input)
    out = jax.block_until_ready(out)
    assert out.shape == (2, len(CLASSES)), out.shape
    assert bool(jnp.all(jnp.isfinite(out)))
    print("KERNEL_OK")
</pallas_src>

<mosaic_0001>
module attributes {stable_mosaic.version = 11 : i64} {
  func.func @_conv_pair_kernel(%arg0: i32, %arg1: memref<1x256x49xf32, #tpu.memory_space<vmem>>, %arg2: memref<256x256xf32, #tpu.memory_space<vmem>>, %arg3: memref<256x1xf32, #tpu.memory_space<vmem>>, %arg4: memref<256x256xf32, #tpu.memory_space<vmem>>, %arg5: memref<256x1xf32, #tpu.memory_space<vmem>>, %arg6: memref<1x256x49xf32, #tpu.memory_space<vmem>>) attributes {dimension_semantics = [#tpu.dimension_semantics<parallel>], iteration_bounds = array<i64: 2>, scalar_prefetch = 0 : i64, scratch_operands = 0 : i64, tpu.core_type = #tpu.core_type<tc>, window_params = [{transform_indices = @transform_0, window_bounds = array<i64: 1, 256, 49>}, {pipeline_mode = #tpu.pipeline_mode<synchronous>, transform_indices = @transform_1, window_bounds = array<i64: 256, 256>}, {pipeline_mode = #tpu.pipeline_mode<synchronous>, transform_indices = @transform_2, window_bounds = array<i64: 256, 1>}, {pipeline_mode = #tpu.pipeline_mode<synchronous>, transform_indices = @transform_3, window_bounds = array<i64: 256, 256>}, {pipeline_mode = #tpu.pipeline_mode<synchronous>, transform_indices = @transform_4, window_bounds = array<i64: 256, 1>}, {transform_indices = @transform_5, window_bounds = array<i64: 1, 256, 49>}]} {
    %c0 = arith.constant 0 : index
    %c0_0 = arith.constant 0 : index
    %c0_1 = arith.constant 0 : index
    %0 = vector.load %arg1[%c0, %c0_0, %c0_1] : memref<1x256x49xf32, #tpu.memory_space<vmem>>, vector<1x256x49xf32>
    %1 = vector.shape_cast %0 : vector<1x256x49xf32> to vector<256x49xf32>
    %c0_2 = arith.constant 0 : index
    %c0_3 = arith.constant 0 : index
    %2 = vector.load %arg2[%c0_2, %c0_3] : memref<256x256xf32, #tpu.memory_space<vmem>>, vector<256x256xf32>
    %cst = arith.constant dense<0.000000e+00> : vector<256x49xf32>
    %3 = tpu.matmul %2, %1, %cst {dimension_numbers = #tpu.dot_dimension_numbers<[1], [0], [0], [1], [0, 0, 1, 1], [], []>} : vector<256x256xf32>, vector<256x49xf32>, vector<256x49xf32> -> vector<256x49xf32>
    %c0_4 = arith.constant 0 : index
    %c0_5 = arith.constant 0 : index
    %4 = vector.load %arg3[%c0_4, %c0_5] : memref<256x1xf32, #tpu.memory_space<vmem>>, vector<256x1xf32>
    %5 = vector.broadcast %4 : vector<256x1xf32> to vector<256x49xf32>
    %6 = arith.addf %3, %5 : vector<256x49xf32>
    %cst_6 = arith.constant 0.000000e+00 : f32
    %7 = vector.broadcast %cst_6 : f32 to vector<256x49xf32>
    %8 = arith.maximumf %6, %7 : vector<256x49xf32>
    %c0_7 = arith.constant 0 : index
    %c0_8 = arith.constant 0 : index
    %9 = vector.load %arg4[%c0_7, %c0_8] : memref<256x256xf32, #tpu.memory_space<vmem>>, vector<256x256xf32>
    %cst_9 = arith.constant dense<0.000000e+00> : vector<256x49xf32>
    %10 = tpu.matmul %9, %8, %cst_9 {dimension_numbers = #tpu.dot_dimension_numbers<[1], [0], [0], [1], [0, 0, 1, 1], [], []>} : vector<256x256xf32>, vector<256x49xf32>, vector<256x49xf32> -> vector<256x49xf32>
    %c0_10 = arith.constant 0 : index
    %c0_11 = arith.constant 0 : index
    %11 = vector.load %arg5[%c0_10, %c0_11] : memref<256x1xf32, #tpu.memory_space<vmem>>, vector<256x1xf32>
    %12 = vector.broadcast %11 : vector<256x1xf32> to vector<256x49xf32>
    %13 = arith.addf %10, %12 : vector<256x49xf32>
    %cst_12 = arith.constant 0.000000e+00 : f32
    %14 = vector.broadcast %cst_12 : f32 to vector<256x49xf32>
    %15 = arith.maximumf %13, %14 : vector<256x49xf32>
    %c0_13 = arith.constant 0 : index
    %c0_14 = arith.constant 0 : index
    %c0_15 = arith.constant 0 : index
    %16 = vector.load %arg6[%c0_13, %c0_14, %c0_15] : memref<1x256x49xf32, #tpu.memory_space<vmem>>, vector<1x256x49xf32>
    %17 = vector.shape_cast %16 : vector<1x256x49xf32> to vector<256x49xf32>
    %18 = vector.shape_cast %15 : vector<256x49xf32> to vector<1x256x49xf32>
    tpu.vector_store %arg6[%c0_13, %c0_14, %c0_15], %18 {strides = array<i32>} : memref<1x256x49xf32, #tpu.memory_space<vmem>>, vector<1x256x49xf32>,
    return
  }
  func.func @transform_0(%arg0: i32) -> (i32, i32, i32) {
    %c0_i32 = arith.constant 0 : i32
    %c0_i32_0 = arith.constant 0 : i32
    %c0_i32_1 = arith.constant 0 : i32
    return %arg0, %c0_i32, %c0_i32_0 : i32, i32, i32
  }
  func.func @transform_1(%arg0: i32) -> (i32, i32) {
    %c0_i32 = arith.constant 0 : i32
    %c0_i32_0 = arith.constant 0 : i32
    %c0_i32_1 = arith.constant 0 : i32
    return %c0_i32, %c0_i32_0 : i32, i32
  }
  func.func @transform_2(%arg0: i32) -> (i32, i32) {
    %c0_i32 = arith.constant 0 : i32
    %c0_i32_0 = arith.constant 0 : i32
    %c0_i32_1 = arith.constant 0 : i32
    return %c0_i32, %c0_i32_0 : i32, i32
  }
  func.func @transform_3(%arg0: i32) -> (i32, i32) {
    %c0_i32 = arith.constant 0 : i32
    %c0_i32_0 = arith.constant 0 : i32
    %c0_i32_1 = arith.constant 0 : i32
    return %c0_i32, %c0_i32_0 : i32, i32
  }
  func.func @transform_4(%arg0: i32) -> (i32, i32) {
    %c0_i32 = arith.constant 0 : i32
    %c0_i32_0 = arith.constant 0 : i32
    %c0_i32_1 = arith.constant 0 : i32
    return %c0_i32, %c0_i32_0 : i32, i32
  }
  func.func @transform_5(%arg0: i32) -> (i32, i32, i32) {
    %c0_i32 = arith.constant 0 : i32
    %c0_i32_0 = arith.constant 0 : i32
    %c0_i32_1 = arith.constant 0 : i32
    return %arg0, %c0_i32, %c0_i32_0 : i32, i32, i32
  }
}

</mosaic_0001>

<llo_original>
// kernel: tpu_custom_call.1
$region0: #{tpu_custom_call.1}
  #allocation0 [shape = 'u32[]', space=smem, size = 0x4, offset = 0x4, fixed_abs, tag = 'smem constant byte address 0x4 - core index']
  #allocation1 [shape = 'u32[72,128]{1,0:T(1,128)}', space=vmem, size = 0x9000, scoped, tag = 'internal scratch']
  %s0 = inlined_call_operand.vmem [shape: f32[2,256,49], index: 0, kind: input, shape index: {}]
  %s1 = inlined_call_operand.vmem [shape: f32[256,256], index: 1, kind: input, shape index: {}]
  %s2 = inlined_call_operand.vmem [shape: f32[256,1], index: 2, kind: input, shape index: {}]
  %s3 = inlined_call_operand.vmem [shape: f32[256,256], index: 3, kind: input, shape index: {}]
  %s4 = inlined_call_operand.vmem [shape: f32[256,1], index: 4, kind: input, shape index: {}]
  %s5 = inlined_call_operand.vmem [shape: f32[2,256,49], index: 5, kind: output, shape index: {}]
  %s6 = sld [smem:[#allocation0]]
  $region53: #{tpu_custom_call.1} parent=0
    _
  %s8 = ssub.s32 1, %s6
  %s9 = scalar_select 0, %s8, %s6
  loop: start=0, step=1, limit=4
  $region2: #{tpu_custom_call.1} parent=0 // loop_pre_header
    _
  $region3: #{tpu_custom_call.1} parent=0 // loop_header
    %s11 = sphi 0, %s15
    %p12 = scmp.ge.s32.totalorder %s11, 4
    %s21 = sphi 0, %s23
    %s24 = sphi 0, %s21
    %s25 = sphi 0, %s24
    %s41 = sphi 0, %s25
    %s45 = sphi 0, %s45
    %s47 = sphi 0, %s45
    %s48 = sphi 0, %s47
    %s62 = sphi 0, %s48
    %s66 = sphi 0, %s66
    %s68 = sphi 0, %s66
    %s69 = sphi 0, %s68
    %s83 = sphi 0, %s69
    %s87 = sphi 0, %s87
    %s89 = sphi 0, %s87
    %s90 = sphi 0, %s89
    %s104 = sphi 0, %s90
    %s108 = sphi 0, %s108
    %s110 = sphi 0, %s108
    %s111 = sphi 0, %s110
    %s125 = sphi 0, %s111
    %s131 = sphi 0, %s133
    %s134 = sphi 0, %s131
    %s135 = sphi 0, %s134
    %s151 = sphi 0, %s135
  $region4: #{tpu_custom_call.1} parent=0 // loop_header_branch
    %14 = sbr.rel (%p12) target = $region8
  $region5: #{tpu_custom_call.1} parent=0 // loop_body
    %s16 = ssub.s32 %s11, 1
    %s17 = ssub.s32 %s11, 2
    %s18 = sadd.s32 %s11, 1
    %s19 = ssub.s32 %s11, %s18
    %p20 = scmp.eq.s32.totalorder %s19, 0
    %s22 = sadd.s32 %s21, 1
    %s23 = scalar_select %p20, %s21, %s22
    %p26 = pneg %p20
    %p27 = scmp.eq.s32.totalorder %s11, 1
    %p28 = por %p26, %p27
    %p29 = scmp.ne.s32.totalorder %s21, %s24
    %p30 = scmp.eq.s32.totalorder %s11, 0
    %p31 = por %p29, %p30
    %p32 = scmp.ne.s32.totalorder %s21, %s24
    %p33 = scmp.eq.s32.totalorder %s16, 1
    %p34 = por %p32, %p33
    %p35 = scmp.ne.s32.totalorder %s24, %s25
    %p36 = scmp.eq.s32.totalorder %s16, 0
    %p37 = por %p35, %p36
    %p38 = scmp.ne.s32.totalorder %s24, %s25
    %p39 = scmp.eq.s32.totalorder %s17, 1
    %p40 = por %p38, %p39
    %p42 = scmp.ne.s32.totalorder %s25, %s41
    %p43 = scmp.eq.s32.totalorder %s17, 0
    %p44 = por %p42, %p43
    %s46 = sadd.s32 %s45, 1
    %p49 = scmp.eq.s32.totalorder %s11, 1
    %p50 = scmp.ne.s32.totalorder %s45, %s47
    %p51 = scmp.eq.s32.totalorder %s11, 0
    %p52 = por %p50, %p51
    %p53 = scmp.ne.s32.totalorder %s45, %s47
    %p54 = scmp.eq.s32.totalorder %s16, 1
    %p55 = por %p53, %p54
    %p56 = scmp.ne.s32.totalorder %s47, %s48
    %p57 = scmp.eq.s32.totalorder %s16, 0
    %p58 = por %p56, %p57
    %p59 = scmp.ne.s32.totalorder %s47, %s48
    %p60 = scmp.eq.s32.totalorder %s17, 1
    %p61 = por %p59, %p60
    %p63 = scmp.ne.s32.totalorder %s48, %s62
    %p64 = scmp.eq.s32.totalorder %s17, 0
    %p65 = por %p63, %p64
    %s67 = sadd.s32 %s66, 1
    %p70 = scmp.eq.s32.totalorder %s11, 1
    %p71 = scmp.ne.s32.totalorder %s66, %s68
    %p72 = scmp.eq.s32.totalorder %s11, 0
    %p73 = por %p71, %p72
    %p74 = scmp.ne.s32.totalorder %s66, %s68
    %p75 = scmp.eq.s32.totalorder %s16, 1
    %p76 = por %p74, %p75
    %p77 = scmp.ne.s32.totalorder %s68, %s69
    %p78 = scmp.eq.s32.totalorder %s16, 0
    %p79 = por %p77, %p78
    %p80 = scmp.ne.s32.totalorder %s68, %s69
    %p81 = scmp.eq.s32.totalorder %s17, 1
    %p82 = por %p80, %p81
    %p84 = scmp.ne.s32.totalorder %s69, %s83
    %p85 = scmp.eq.s32.totalorder %s17, 0
    %p86 = por %p84, %p85
    %s88 = sadd.s32 %s87, 1
    %p91 = scmp.eq.s32.totalorder %s11, 1
    %p92 = scmp.ne.s32.totalorder %s87, %s89
    %p93 = scmp.eq.s32.totalorder %s11, 0
    %p94 = por %p92, %p93
    %p95 = scmp.ne.s32.totalorder %s87, %s89
    %p96 = scmp.eq.s32.totalorder %s16, 1
    %p97 = por %p95, %p96
    %p98 = scmp.ne.s32.totalorder %s89, %s90
    %p99 = scmp.eq.s32.totalorder %s16, 0
    %p100 = por %p98, %p99
    %p101 = scmp.ne.s32.totalorder %s89, %s90
    %p102 = scmp.eq.s32.totalorder %s17, 1
    %p103 = por %p101, %p102
    %p105 = scmp.ne.s32.totalorder %s90, %s104
    %p106 = scmp.eq.s32.totalorder %s17, 0
    %p107 = por %p105, %p106
    %s109 = sadd.s32 %s108, 1
    %p112 = scmp.eq.s32.totalorder %s11, 1
    %p113 = scmp.ne.s32.totalorder %s108, %s110
    %p114 = scmp.eq.s32.totalorder %s11, 0
    %p115 = por %p113, %p114
    %p116 = scmp.ne.s32.totalorder %s108, %s110
    %p117 = scmp.eq.s32.totalorder %s16, 1
    %p118 = por %p116, %p117
    %p119 = scmp.ne.s32.totalorder %s110, %s111
    %p120 = scmp.eq.s32.totalorder %s16, 0
    %p121 = por %p119, %p120
    %p122 = scmp.ne.s32.totalorder %s110, %s111
    %p123 = scmp.eq.s32.totalorder %s17, 1
    %p124 = por %p122, %p123
    %p126 = scmp.ne.s32.totalorder %s111, %s125
    %p127 = scmp.eq.s32.totalorder %s17, 0
    %p128 = por %p126, %p127
    %s129 = ssub.s32 %s11, %s18
    %p130 = scmp.eq.s32.totalorder %s129, 0
    %s132 = sadd.s32 %s131, 1
    %s133 = scalar_select %p130, %s131, %s132
    %p136 = pneg %p130
    %p137 = scmp.eq.s32.totalorder %s11, 1
    %p138 = por %p136, %p137
    %p139 = scmp.ne.s32.totalorder %s131, %s134
    %p140 = scmp.eq.s32.totalorder %s11, 0
    %p141 = por %p139, %p140
    %p142 = scmp.ne.s32.totalorder %s131, %s134
    %p143 = scmp.eq.s32.totalorder %s16, 1
    %p144 = por %p142, %p143
    %p145 = scmp.ne.s32.totalorder %s134, %s135
    %p146 = scmp.eq.s32.totalorder %s16, 0
    %p147 = por %p145, %p146
    %p148 = scmp.ne.s32.totalorder %s134, %s135
    %p149 = scmp.eq.s32.totalorder %s17, 1
    %p150 = por %p148, %p149
    %p152 = scmp.ne.s32.totalorder %s135, %s151
    %p153 = scmp.eq.s32.totalorder %s17, 0
    %p154 = por %p152, %p153
    %p155 = scmp.le.s32.totalorder 1, %s11
    %p156 = scmp.lt.s32.totalorder %s11, 3
    %p157 = pnand %p155, %p156
    %p158 = pneg %p157
    // Predicated region
    $region9: #{tpu_custom_call.1} parent=5 // pred_check
      _
    $region10: #{tpu_custom_call.1} parent=5 // pred_check_branch
      %160 = sbr.rel (%p157) target = $region12
    $region11: #{tpu_custom_call.1} parent=5 // pred_region
      %s161 = ssub.s32 %s11, 1
      // Predicated region
      $region13: #{tpu_custom_call.1} parent=11 // pred_check
        %p162 = pneg %p58
      $region14: #{tpu_custom_call.1} parent=11 // pred_check_branch
        %164 = sbr.rel (%p162) target = $region16
      $region15: #{tpu_custom_call.1} parent=11 // pred_region
        _
      $region16: #{tpu_custom_call.1} parent=11 // pred_fallthru
        _
      // Predicated region
      $region17: #{tpu_custom_call.1} parent=11 // pred_check
        %p165 = pneg %p79
      $region18: #{tpu_custom_call.1} parent=11 // pred_check_branch
        %167 = sbr.rel (%p165) target = $region20
      $region19: #{tpu_custom_call.1} parent=11 // pred_region
        _
      $region20: #{tpu_custom_call.1} parent=11 // pred_fallthru
        _
      // Predicated region
      $region21: #{tpu_custom_call.1} parent=11 // pred_check
        %p168 = pneg %p100
      $region22: #{tpu_custom_call.1} parent=11 // pred_check_branch
        %170 = sbr.rel (%p168) target = $region24
      $region23: #{tpu_custom_call.1} parent=11 // pred_region
        _
      $region24: #{tpu_custom_call.1} parent=11 // pred_fallthru
        _
      // Predicated region
      $region25: #{tpu_custom_call.1} parent=11 // pred_check
        %p171 = pneg %p121
      $region26: #{tpu_custom_call.1} parent=11 // pred_check_branch
        %173 = sbr.rel (%p171) target = $region28
      $region27: #{tpu_custom_call.1} parent=11 // pred_region
        _
      $region28: #{tpu_custom_call.1} parent=11 // pred_fallthru
        _
    $region12: #{tpu_custom_call.1} parent=5 // pred_fallthru
      _
    %p174 = scmp.lt.s32.totalorder %s11, 2
    // Predicated region
    $region29: #{tpu_custom_call.1} parent=5 // pred_check
      %p175 = pneg %p174
    $region30: #{tpu_custom_call.1} parent=5 // pred_check_branch
      %177 = sbr.rel (%p175) target = $region32
    $region31: #{tpu_custom_call.1} parent=5 // pred_region
      // Predicated region
      $region33: #{tpu_custom_call.1} parent=31 // pred_check
        %p178 = pneg %p31
      $region34: #{tpu_custom_call.1} parent=31 // pred_check_branch
        %180 = sbr.rel (%p178) target = $region36
      $region35: #{tpu_custom_call.1} parent=31 // pred_region
        %p181 = scmp.lt.s32.totalorder %s11, 1
        %s182 = scalar_select %p181, %s11, 1
        %s183 = smul.addr %s182, 32
        %s184 = smul.addr %s183, 8
        %s185 = scalar_lea.vmem %s0, %s184
      $region36: #{tpu_custom_call.1} parent=31 // pred_fallthru
        _
    $region32: #{tpu_custom_call.1} parent=5 // pred_fallthru
      _
    %p186 = scmp.le.s32.totalorder 1, %s11
    %p187 = scmp.lt.s32.totalorder %s11, 3
    %p188 = pnand %p186, %p187
    %p189 = pneg %p188
    // Predicated region
    $region37: #{tpu_custom_call.1} parent=5 // pred_check
      _
    $region38: #{tpu_custom_call.1} parent=5 // pred_check_branch
      %191 = sbr.rel (%p188) target = $region40
    $region39: #{tpu_custom_call.1} parent=5 // pred_region
      %s192 = ssub.s32 %s11, 1
      %p193 = scmp.lt.s32.totalorder %s16, 1
      %s194 = scalar_select %p193, %s16, 1
      %s195 = smul.addr %s194, 32
      %s196 = smul.addr %s195, 8
      %s197 = scalar_lea.vmem %s0, %s196
      %p198 = pneg %p37
      %p199 = pneg %p34
      %p200 = pneg %p58
      %p201 = pneg %p55
      %p202 = pneg %p79
      %p203 = pneg %p76
      %p204 = pneg %p100
      %p205 = pneg %p97
      %p206 = pneg %p121
      %p207 = pneg %p118
      %p208 = pneg %p147
      %p209 = pneg %p144
      %p210 = scmp.lt.s32.totalorder %s16, 1
      %s211 = scalar_select %p210, %s16, 1
      %s212 = smul.addr %s211, 32
      %s213 = smul.addr %s212, 8
      %s214 = scalar_lea.vmem %s5, %s213
      %p215 = scmp.lt.s32.totalorder %s16, 1
      %s216 = scalar_select %p215, %s16, 1
      %s217 = smul.addr %s216, 32
      %s218 = smul.addr %s217, 8
      %s219 = scalar_lea.vmem %s0, %s218
      %p220 = scmp.lt.s32.totalorder %s16, 1
      %s221 = scalar_select %p220, %s16, 1
      %s222 = smul.addr %s221, 32
      %s223 = smul.addr %s222, 8
      %s224 = scalar_lea.vmem %s5, %s223
      %v225 = vld [vmem:[%s219] sm:$0xff]
      %v226 = vld [vmem:[%s219 + $0x8] sm:$0xff]
      %v227 = vld [vmem:[%s219 + $0x10] sm:$0xff]
      %v228 = vld [vmem:[%s219 + $0x18] sm:$0xff]
      %v229 = vld [vmem:[%s219 + $0x20] sm:$0xff]
      %v230 = vld [vmem:[%s219 + $0x28] sm:$0xff]
      %v231 = vld [vmem:[%s219 + $0x30] sm:$0xff]
      %v232 = vld [vmem:[%s219 + $0x38] sm:$0xff]
      %v233 = vld [vmem:[%s219 + $0x40] sm:$0xff]
      %v234 = vld [vmem:[%s219 + $0x48] sm:$0xff]
      %v235 = vld [vmem:[%s219 + $0x50] sm:$0xff]
      %v236 = vld [vmem:[%s219 + $0x58] sm:$0xff]
      %v237 = vld [vmem:[%s219 + $0x60] sm:$0xff]
      %v238 = vld [vmem:[%s219 + $0x68] sm:$0xff]
      %v239 = vld [vmem:[%s219 + $0x70] sm:$0xff]
      %v240 = vld [vmem:[%s219 + $0x78] sm:$0xff]
      %v241 = vld [vmem:[%s219 + $0x80] sm:$0xff]
      %v242 = vld [vmem:[%s219 + $0x88] sm:$0xff]
      %v243 = vld [vmem:[%s219 + $0x90] sm:$0xff]
      %v244 = vld [vmem:[%s219 + $0x98] sm:$0xff]
      %v245 = vld [vmem:[%s219 + $0xa0] sm:$0xff]
      %v246 = vld [vmem:[%s219 + $0xa8] sm:$0xff]
      %v247 = vld [vmem:[%s219 + $0xb0] sm:$0xff]
      %v248 = vld [vmem:[%s219 + $0xb8] sm:$0xff]
      %v249 = vld [vmem:[%s219 + $0xc0] sm:$0xff]
      %v250 = vld [vmem:[%s219 + $0xc8] sm:$0xff]
      %v251 = vld [vmem:[%s219 + $0xd0] sm:$0xff]
      %v252 = vld [vmem:[%s219 + $0xd8] sm:$0xff]
      %v253 = vld [vmem:[%s219 + $0xe0] sm:$0xff]
      %v254 = vld [vmem:[%s219 + $0xe8] sm:$0xff]
      %v255 = vld [vmem:[%s219 + $0xf0] sm:$0xff]
      %v256 = vld [vmem:[%s219 + $0xf8] sm:$0xff]
      %v257 = vld [vmem:[%s1] sm:$0xff]
      %v258 = vld [vmem:[%s1 + $0x8] sm:$0xff]
      %v259 = vld [vmem:[%s1 + $0x10] sm:$0xff]
      %v260 = vld [vmem:[%s1 + $0x18] sm:$0xff]
      %v261 = vld [vmem:[%s1 + $0x20] sm:$0xff]
      %v262 = vld [vmem:[%s1 + $0x28] sm:$0xff]
      %v263 = vld [vmem:[%s1 + $0x30] sm:$0xff]
      %v264 = vld [vmem:[%s1 + $0x38] sm:$0xff]
      %v265 = vld [vmem:[%s1 + $0x40] sm:$0xff]
      %v266 = vld [vmem:[%s1 + $0x48] sm:$0xff]
      %v267 = vld [vmem:[%s1 + $0x50] sm:$0xff]
      %v268 = vld [vmem:[%s1 + $0x58] sm:$0xff]
      %v269 = vld [vmem:[%s1 + $0x60] sm:$0xff]
      %v270 = vld [vmem:[%s1 + $0x68] sm:$0xff]
      %v271 = vld [vmem:[%s1 + $0x70] sm:$0xff]
      %v272 = vld [vmem:[%s1 + $0x78] sm:$0xff]
      %v273 = vld [vmem:[%s1 + $0x80] sm:$0xff]
      %v274 = vld [vmem:[%s1 + $0x88] sm:$0xff]
      %v275 = vld [vmem:[%s1 + $0x90] sm:$0xff]
      %v276 = vld [vmem:[%s1 + $0x98] sm:$0xff]
      %v277 = vld [vmem:[%s1 + $0xa0] sm:$0xff]
      %v278 = vld [vmem:[%s1 + $0xa8] sm:$0xff]
      %v279 = vld [vmem:[%s1 + $0xb0] sm:$0xff]
      %v280 = vld [vmem:[%s1 + $0xb8] sm:$0xff]
      %v281 = vld [vmem:[%s1 + $0xc0] sm:$0xff]
      %v282 = vld [vmem:[%s1 + $0xc8] sm:$0xff]
      %v283 = vld [vmem:[%s1 + $0xd0] sm:$0xff]
      %v284 = vld [vmem:[%s1 + $0xd8] sm:$0xff]
      %v285 = vld [vmem:[%s1 + $0xe0] sm:$0xff]
      %v286 = vld [vmem:[%s1 + $0xe8] sm:$0xff]
      %v287 = vld [vmem:[%s1 + $0xf0] sm:$0xff]
      %v288 = vld [vmem:[%s1 + $0xf8] sm:$0xff]
      %v289 = vld [vmem:[%s1 + $0x100] sm:$0xff]
      %v290 = vld [vmem:[%s1 + $0x108] sm:$0xff]
      %v291 = vld [vmem:[%s1 + $0x110] sm:$0xff]
      %v292 = vld [vmem:[%s1 + $0x118] sm:$0xff]
      %v293 = vld [vmem:[%s1 + $0x120] sm:$0xff]
      %v294 = vld [vmem:[%s1 + $0x128] sm:$0xff]
      %v295 = vld [vmem:[%s1 + $0x130] sm:$0xff]
      %v296 = vld [vmem:[%s1 + $0x138] sm:$0xff]
      %v297 = vld [vmem:[%s1 + $0x140] sm:$0xff]
      %v298 = vld [vmem:[%s1 + $0x148] sm:$0xff]
      %v299 = vld [vmem:[%s1 + $0x150] sm:$0xff]
      %v300 = vld [vmem:[%s1 + $0x158] sm:$0xff]
      %v301 = vld [vmem:[%s1 + $0x160] sm:$0xff]
      %v302 = vld [vmem:[%s1 + $0x168] sm:$0xff]
      %v303 = vld [vmem:[%s1 + $0x170] sm:$0xff]
      %v304 = vld [vmem:[%s1 + $0x178] sm:$0xff]
      %v305 = vld [vmem:[%s1 + $0x180] sm:$0xff]
      %v306 = vld [vmem:[%s1 + $0x188] sm:$0xff]
      %v307 = vld [vmem:[%s1 + $0x190] sm:$0xff]
      %v308 = vld [vmem:[%s1 + $0x198] sm:$0xff]
      %v309 = vld [vmem:[%s1 + $0x1a0] sm:$0xff]
      %v310 = vld [vmem:[%s1 + $0x1a8] sm:$0xff]
      %v311 = vld [vmem:[%s1 + $0x1b0] sm:$0xff]
      %v312 = vld [vmem:[%s1 + $0x1b8] sm:$0xff]
      %v313 = vld [vmem:[%s1 + $0x1c0] sm:$0xff]
      %v314 = vld [vmem:[%s1 + $0x1c8] sm:$0xff]
      %v315 = vld [vmem:[%s1 + $0x1d0] sm:$0xff]
      %v316 = vld [vmem:[%s1 + $0x1d8] sm:$0xff]
      %v317 = vld [vmem:[%s1 + $0x1e0] sm:$0xff]
      %v318 = vld [vmem:[%s1 + $0x1e8] sm:$0xff]
      %v319 = vld [vmem:[%s1 + $0x1f0] sm:$0xff]
      %v320 = vld [vmem:[%s1 + $0x1f8] sm:$0xff]
      %v321 = vld [vmem:[%s2] sm:$0xff]
      %v322 = vld [vmem:[%s2 + $0x8] sm:$0xff]
      %v323 = vld [vmem:[%s2 + $0x10] sm:$0xff]
      %v324 = vld [vmem:[%s2 + $0x18] sm:$0xff]
      %v325 = vld [vmem:[%s2 + $0x20] sm:$0xff]
      %v326 = vld [vmem:[%s2 + $0x28] sm:$0xff]
      %v327 = vld [vmem:[%s2 + $0x30] sm:$0xff]
      %v328 = vld [vmem:[%s2 + $0x38] sm:$0xff]
      %v329 = vld [vmem:[%s2 + $0x40] sm:$0xff]
      %v330 = vld [vmem:[%s2 + $0x48] sm:$0xff]
      %v331 = vld [vmem:[%s2 + $0x50] sm:$0xff]
      %v332 = vld [vmem:[%s2 + $0x58] sm:$0xff]
      %v333 = vld [vmem:[%s2 + $0x60] sm:$0xff]
      %v334 = vld [vmem:[%s2 + $0x68] sm:$0xff]
      %v335 = vld [vmem:[%s2 + $0x70] sm:$0xff]
      %v336 = vld [vmem:[%s2 + $0x78] sm:$0xff]
      %v337 = vld [vmem:[%s2 + $0x80] sm:$0xff]
      %v338 = vld [vmem:[%s2 + $0x88] sm:$0xff]
      %v339 = vld [vmem:[%s2 + $0x90] sm:$0xff]
      %v340 = vld [vmem:[%s2 + $0x98] sm:$0xff]
      %v341 = vld [vmem:[%s2 + $0xa0] sm:$0xff]
      %v342 = vld [vmem:[%s2 + $0xa8] sm:$0xff]
      %v343 = vld [vmem:[%s2 + $0xb0] sm:$0xff]
      %v344 = vld [vmem:[%s2 + $0xb8] sm:$0xff]
      %v345 = vld [vmem:[%s2 + $0xc0] sm:$0xff]
      %v346 = vld [vmem:[%s2 + $0xc8] sm:$0xff]
      %v347 = vld [vmem:[%s2 + $0xd0] sm:$0xff]
      %v348 = vld [vmem:[%s2 + $0xd8] sm:$0xff]
      %v349 = vld [vmem:[%s2 + $0xe0] sm:$0xff]
      %v350 = vld [vmem:[%s2 + $0xe8] sm:$0xff]
      %v351 = vld [vmem:[%s2 + $0xf0] sm:$0xff]
      %v352 = vld [vmem:[%s2 + $0xf8] sm:$0xff]
      %354 = vset.pattern.permute.xlu0 0
      %355 = vperm.xlu0 %354, %v321
      %v356 = vpop.permute.xlu0 %355
      %359 = vset.pattern.permute.xlu0 0
      %360 = vperm.xlu0 %359, %v322
      %v361 = vpop.permute.xlu0 %360
      %364 = vset.pattern.permute.xlu0 0
      %365 = vperm.xlu0 %364, %v323
      %v366 = vpop.permute.xlu0 %365
      %369 = vset.pattern.permute.xlu0 0
      %370 = vperm.xlu0 %369, %v324
      %v371 = vpop.permute.xlu0 %370
      %374 = vset.pattern.permute.xlu0 0
      %375 = vperm.xlu0 %374, %v325
      %v376 = vpop.permute.xlu0 %375
      %379 = vset.pattern.permute.xlu0 0
      %380 = vperm.xlu0 %379, %v326
      %v381 = vpop.permute.xlu0 %380
      %384 = vset.pattern.permute.xlu0 0
      %385 = vperm.xlu0 %384, %v327
      %v386 = vpop.permute.xlu0 %385
      %389 = vset.pattern.permute.xlu0 0
      %390 = vperm.xlu0 %389, %v328
      %v391 = vpop.permute.xlu0 %390
      %394 = vset.pattern.permute.xlu0 0
      %395 = vperm.xlu0 %394, %v329
      %v396 = vpop.permute.xlu0 %395
      %399 = vset.pattern.permute.xlu0 0
      %400 = vperm.xlu0 %399, %v330
      %v401 = vpop.permute.xlu0 %400
      %404 = vset.pattern.permute.xlu0 0
      %405 = vperm.xlu0 %404, %v331
      %v406 = vpop.permute.xlu0 %405
      %409 = vset.pattern.permute.xlu0 0
      %410 = vperm.xlu0 %409, %v332
      %v411 = vpop.permute.xlu0 %410
      %414 = vset.pattern.permute.xlu0 0
      %415 = vperm.xlu0 %414, %v333
      %v416 = vpop.permute.xlu0 %415
      %419 = vset.pattern.permute.xlu0 0
      %420 = vperm.xlu0 %419, %v334
      %v421 = vpop.permute.xlu0 %420
      %424 = vset.pattern.permute.xlu0 0
      %425 = vperm.xlu0 %424, %v335
      %v426 = vpop.permute.xlu0 %425
      %429 = vset.pattern.permute.xlu0 0
      %430 = vperm.xlu0 %429, %v336
      %v431 = vpop.permute.xlu0 %430
      %434 = vset.pattern.permute.xlu0 0
      %435 = vperm.xlu0 %434, %v337
      %v436 = vpop.permute.xlu0 %435
      %439 = vset.pattern.permute.xlu0 0
      %440 = vperm.xlu0 %439, %v338
      %v441 = vpop.permute.xlu0 %440
      %444 = vset.pattern.permute.xlu0 0
      %445 = vperm.xlu0 %444, %v339
      %v446 = vpop.permute.xlu0 %445
      %449 = vset.pattern.permute.xlu0 0
      %450 = vperm.xlu0 %449, %v340
      %v451 = vpop.permute.xlu0 %450
      %454 = vset.pattern.permute.xlu0 0
      %455 = vperm.xlu0 %454, %v341
      %v456 = vpop.permute.xlu0 %455
      %459 = vset.pattern.permute.xlu0 0
      %460 = vperm.xlu0 %459, %v342
      %v461 = vpop.permute.xlu0 %460
      %464 = vset.pattern.permute.xlu0 0
      %465 = vperm.xlu0 %464, %v343
      %v466 = vpop.permute.xlu0 %465
      %469 = vset.pattern.permute.xlu0 0
      %470 = vperm.xlu0 %469, %v344
      %v471 = vpop.permute.xlu0 %470
      %474 = vset.pattern.permute.xlu0 0
      %475 = vperm.xlu0 %474, %v345
      %v476 = vpop.permute.xlu0 %475
      %479 = vset.pattern.permute.xlu0 0
      %480 = vperm.xlu0 %479, %v346
      %v481 = vpop.permute.xlu0 %480
      %484 = vset.pattern.permute.xlu0 0
      %485 = vperm.xlu0 %484, %v347
      %v486 = vpop.permute.xlu0 %485
      %489 = vset.pattern.permute.xlu0 0
      %490 = vperm.xlu0 %489, %v348
      %v491 = vpop.permute.xlu0 %490
      %494 = vset.pattern.permute.xlu0 0
      %495 = vperm.xlu0 %494, %v349
      %v496 = vpop.permute.xlu0 %495
      %499 = vset.pattern.permute.xlu0 0
      %500 = vperm.xlu0 %499, %v350
      %v501 = vpop.permute.xlu0 %500
      %504 = vset.pattern.permute.xlu0 0
      %505 = vperm.xlu0 %504, %v351
      %v506 = vpop.permute.xlu0 %505
      %509 = vset.pattern.permute.xlu0 0
      %510 = vperm.xlu0 %509, %v352
      %v511 = vpop.permute.xlu0 %510
      %513 = vmatpush.msra.mxu0 %v240
      %514 = vmatpush.msra.mxu0 %v239
      %515 = vmatpush.msra.mxu0 %v238
      %516 = vmatpush.msra.mxu0 %v237
      %517 = vmatpush.msra.mxu0 %v236
      %518 = vmatpush.msra.mxu0 %v235
      %519 = vmatpush.msra.mxu0 %v234
      %520 = vmatpush.msra.mxu0 %v233
      %521 = vmatpush.msra.mxu0 %v232
      %522 = vmatpush.msra.mxu0 %v231
      %523 = vmatpush.msra.mxu0 %v230
      %524 = vmatpush.msra.mxu0 %v229
      %525 = vmatpush.msra.mxu0 %v228
      %526 = vmatpush.msra.mxu0 %v227
      %527 = vmatpush.msra.mxu0 %v226
      %528 = vmatpush.msra.mxu0 %v225
      %529 = vmatmul.f32.gmra.mxu0 %v257
      %v530 = vpop.f32.mrf.mxu0
      %v531 = vadd.f32 %v356, %v530
      %532 = vmatmul.f32.gmra.mxu0 %v259
      %v533 = vpop.f32.mrf.mxu0
      %v534 = vadd.f32 %v361, %v533
      %535 = vmatmul.f32.gmra.mxu0 %v261
      %v536 = vpop.f32.mrf.mxu0
      %v537 = vadd.f32 %v366, %v536
      %538 = vmatmul.f32.gmra.mxu0 %v263
      %v539 = vpop.f32.mrf.mxu0
      %v540 = vadd.f32 %v371, %v539
      %541 = vmatmul.f32.gmra.mxu0 %v265
      %v542 = vpop.f32.mrf.mxu0
      %v543 = vadd.f32 %v376, %v542
      %544 = vmatmul.f32.gmra.mxu0 %v267
      %v545 = vpop.f32.mrf.mxu0
      %v546 = vadd.f32 %v381, %v545
      %547 = vmatmul.f32.gmra.mxu0 %v269
      %v548 = vpop.f32.mrf.mxu0
      %v549 = vadd.f32 %v386, %v548
      %550 = vmatmul.f32.gmra.mxu0 %v271
      %v551 = vpop.f32.mrf.mxu0
      %v552 = vadd.f32 %v391, %v551
      %553 = vmatmul.f32.gmra.mxu0 %v273
      %v554 = vpop.f32.mrf.mxu0
      %v555 = vadd.f32 %v396, %v554
      %556 = vmatmul.f32.gmra.mxu0 %v275
      %v557 = vpop.f32.mrf.mxu0
      %v558 = vadd.f32 %v401, %v557
      %559 = vmatmul.f32.gmra.mxu0 %v277
      %v560 = vpop.f32.mrf.mxu0
      %v561 = vadd.f32 %v406, %v560
      %562 = vmatmul.f32.gmra.mxu0 %v279
      %v563 = vpop.f32.mrf.mxu0
      %v564 = vadd.f32 %v411, %v563
      %565 = vmatmul.f32.gmra.mxu0 %v281
      %v566 = vpop.f32.mrf.mxu0
      %v567 = vadd.f32 %v416, %v566
      %568 = vmatmul.f32.gmra.mxu0 %v283
      %v569 = vpop.f32.mrf.mxu0
      %v570 = vadd.f32 %v421, %v569
      %571 = vmatmul.f32.gmra.mxu0 %v285
      %v572 = vpop.f32.mrf.mxu0
      %v573 = vadd.f32 %v426, %v572
      %574 = vmatmul.f32.gmra.mxu0 %v287
      %v575 = vpop.f32.mrf.mxu0
      %v576 = vadd.f32 %v431, %v575
      %577 = vmatmul.f32.gmra.mxu0 %v289
      %v578 = vpop.f32.mrf.mxu0
      %v579 = vadd.f32 %v436, %v578
      %580 = vmatmul.f32.gmra.mxu0 %v291
      %v581 = vpop.f32.mrf.mxu0
      %v582 = vadd.f32 %v441, %v581
      %583 = vmatmul.f32.gmra.mxu0 %v293
      %v584 = vpop.f32.mrf.mxu0
      %v585 = vadd.f32 %v446, %v584
      %586 = vmatmul.f32.gmra.mxu0 %v295
      %v587 = vpop.f32.mrf.mxu0
      %v588 = vadd.f32 %v451, %v587
      %589 = vmatmul.f32.gmra.mxu0 %v297
      %v590 = vpop.f32.mrf.mxu0
      %v591 = vadd.f32 %v456, %v590
      %592 = vmatmul.f32.gmra.mxu0 %v299
      %v593 = vpop.f32.mrf.mxu0
      %v594 = vadd.f32 %v461, %v593
      %595 = vmatmul.f32.gmra.mxu0 %v301
      %v596 = vpop.f32.mrf.mxu0
      %v597 = vadd.f32 %v466, %v596
      %598 = vmatmul.f32.gmra.mxu0 %v303
      %v599 = vpop.f32.mrf.mxu0
      %v600 = vadd.f32 %v471, %v599
      %601 = vmatmul.f32.gmra.mxu0 %v305
      %v602 = vpop.f32.mrf.mxu0
      %v603 = vadd.f32 %v476, %v602
      %604 = vmatmul.f32.gmra.mxu0 %v307
      %v605 = vpop.f32.mrf.mxu0
      %v606 = vadd.f32 %v481, %v605
      %607 = vmatmul.f32.gmra.mxu0 %v309
      %v608 = vpop.f32.mrf.mxu0
      %v609 = vadd.f32 %v486, %v608
      %610 = vmatmul.f32.gmra.mxu0 %v311
      %v611 = vpop.f32.mrf.mxu0
      %v612 = vadd.f32 %v491, %v611
      %613 = vmatmul.f32.gmra.mxu0 %v313
      %v614 = vpop.f32.mrf.mxu0
      %v615 = vadd.f32 %v496, %v614
      %616 = vmatmul.f32.gmra.mxu0 %v315
      %v617 = vpop.f32.mrf.mxu0
      %v618 = vadd.f32 %v501, %v617
      %619 = vmatmul.f32.gmra.mxu0 %v317
      %v620 = vpop.f32.mrf.mxu0
      %v621 = vadd.f32 %v506, %v620
      %622 = vmatmul.f32.gmra.mxu0 %v319
      %v623 = vpop.f32.mrf.mxu0
      %v624 = vadd.f32 %v511, %v623
      %625 = vdwg.mxu0
      %626 = vmatpush.msra.mxu0 %v256
      %627 = vmatpush.msra.mxu0 %v255
      %628 = vmatpush.msra.mxu0 %v254
      %629 = vmatpush.msra.mxu0 %v253
      %630 = vmatpush.msra.mxu0 %v252
      %631 = vmatpush.msra.mxu0 %v251
      %632 = vmatpush.msra.mxu0 %v250
      %633 = vmatpush.msra.mxu0 %v249
      %634 = vmatpush.msra.mxu0 %v248
      %635 = vmatpush.msra.mxu0 %v247
      %636 = vmatpush.msra.mxu0 %v246
      %637 = vmatpush.msra.mxu0 %v245
      %638 = vmatpush.msra.mxu0 %v244
      %639 = vmatpush.msra.mxu0 %v243
      %640 = vmatpush.msra.mxu0 %v242
      %641 = vmatpush.msra.mxu0 %v241
      %642 = vmatmul.f32.gmra.mxu0 %v258
      %v643 = vpop.f32.mrf.mxu0
      %v644 = vadd.f32 %v531, %v643
      %645 = vmatmul.f32.gmra.mxu0 %v260
      %v646 = vpop.f32.mrf.mxu0
      %v647 = vadd.f32 %v534, %v646
      %648 = vmatmul.f32.gmra.mxu0 %v262
      %v649 = vpop.f32.mrf.mxu0
      %v650 = vadd.f32 %v537, %v649
      %651 = vmatmul.f32.gmra.mxu0 %v264
      %v652 = vpop.f32.mrf.mxu0
      %v653 = vadd.f32 %v540, %v652
      %654 = vmatmul.f32.gmra.mxu0 %v266
      %v655 = vpop.f32.mrf.mxu0
      %v656 = vadd.f32 %v543, %v655
      %657 = vmatmul.f32.gmra.mxu0 %v268
      %v658 = vpop.f32.mrf.mxu0
      %v659 = vadd.f32 %v546, %v658
      %660 = vmatmul.f32.gmra.mxu0 %v270
      %v661 = vpop.f32.mrf.mxu0
      %v662 = vadd.f32 %v549, %v661
      %663 = vmatmul.f32.gmra.mxu0 %v272
      %v664 = vpop.f32.mrf.mxu0
      %v665 = vadd.f32 %v552, %v664
      %666 = vmatmul.f32.gmra.mxu0 %v274
      %v667 = vpop.f32.mrf.mxu0
      %v668 = vadd.f32 %v555, %v667
      %669 = vmatmul.f32.gmra.mxu0 %v276
      %v670 = vpop.f32.mrf.mxu0
      %v671 = vadd.f32 %v558, %v670
      %672 = vmatmul.f32.gmra.mxu0 %v278
      %v673 = vpop.f32.mrf.mxu0
      %v674 = vadd.f32 %v561, %v673
      %675 = vmatmul.f32.gmra.mxu0 %v280
      %v676 = vpop.f32.mrf.mxu0
      %v677 = vadd.f32 %v564, %v676
      %678 = vmatmul.f32.gmra.mxu0 %v282
      %v679 = vpop.f32.mrf.mxu0
      %v680 = vadd.f32 %v567, %v679
      %681 = vmatmul.f32.gmra.mxu0 %v284
      %v682 = vpop.f32.mrf.mxu0
      %v683 = vadd.f32 %v570, %v682
      %684 = vmatmul.f32.gmra.mxu0 %v286
      %v685 = vpop.f32.mrf.mxu0
      %v686 = vadd.f32 %v573, %v685
      %687 = vmatmul.f32.gmra.mxu0 %v288
      %v688 = vpop.f32.mrf.mxu0
      %v689 = vadd.f32 %v576, %v688
      %690 = vmatmul.f32.gmra.mxu0 %v290
      %v691 = vpop.f32.mrf.mxu0
      %v692 = vadd.f32 %v579, %v691
      %693 = vmatmul.f32.gmra.mxu0 %v292
      %v694 = vpop.f32.mrf.mxu0
      %v695 = vadd.f32 %v582, %v694
      %696 = vmatmul.f32.gmra.mxu0 %v294
      %v697 = vpop.f32.mrf.mxu0
      %v698 = vadd.f32 %v585, %v697
      %699 = vmatmul.f32.gmra.mxu0 %v296
      %v700 = vpop.f32.mrf.mxu0
      %v701 = vadd.f32 %v588, %v700
      %702 = vmatmul.f32.gmra.mxu0 %v298
      %v703 = vpop.f32.mrf.mxu0
      %v704 = vadd.f32 %v591, %v703
      %705 = vmatmul.f32.gmra.mxu0 %v300
      %v706 = vpop.f32.mrf.mxu0
      %v707 = vadd.f32 %v594, %v706
      %708 = vmatmul.f32.gmra.mxu0 %v302
      %v709 = vpop.f32.mrf.mxu0
      %v710 = vadd.f32 %v597, %v709
      %711 = vmatmul.f32.gmra.mxu0 %v304
      %v712 = vpop.f32.mrf.mxu0
      %v713 = vadd.f32 %v600, %v712
      %714 = vmatmul.f32.gmra.mxu0 %v306
      %v715 = vpop.f32.mrf.mxu0
      %v716 = vadd.f32 %v603, %v715
      %717 = vmatmul.f32.gmra.mxu0 %v308
      %v718 = vpop.f32.mrf.mxu0
      %v719 = vadd.f32 %v606, %v718
      %720 = vmatmul.f32.gmra.mxu0 %v310
      %v721 = vpop.f32.mrf.mxu0
      %v722 = vadd.f32 %v609, %v721
      %723 = vmatmul.f32.gmra.mxu0 %v312
      %v724 = vpop.f32.mrf.mxu0
      %v725 = vadd.f32 %v612, %v724
      %726 = vmatmul.f32.gmra.mxu0 %v314
      %v727 = vpop.f32.mrf.mxu0
      %v728 = vadd.f32 %v615, %v727
      %729 = vmatmul.f32.gmra.mxu0 %v316
      %v730 = vpop.f32.mrf.mxu0
      %v731 = vadd.f32 %v618, %v730
      %732 = vmatmul.f32.gmra.mxu0 %v318
      %v733 = vpop.f32.mrf.mxu0
      %v734 = vadd.f32 %v621, %v733
      %735 = vmatmul.f32.gmra.mxu0 %v320
      %v736 = vpop.f32.mrf.mxu0
      %v737 = vadd.f32 %v624, %v736
      %738 = vdwg.mxu0
      %v739 = vmax.f32 %v644, 0.0
      %v740 = vmax.f32 %v647, 0.0
      %v741 = vmax.f32 %v650, 0.0
      %v742 = vmax.f32 %v653, 0.0
      %v743 = vmax.f32 %v656, 0.0
      %v744 = vmax.f32 %v659, 0.0
      %v745 = vmax.f32 %v662, 0.0
      %v746 = vmax.f32 %v665, 0.0
      %v747 = vmax.f32 %v668, 0.0
      %v748 = vmax.f32 %v671, 0.0
      %v749 = vmax.f32 %v674, 0.0
      %v750 = vmax.f32 %v677, 0.0
      %v751 = vmax.f32 %v680, 0.0
      %v752 = vmax.f32 %v683, 0.0
      %v753 = vmax.f32 %v686, 0.0
      %v754 = vmax.f32 %v689, 0.0
      %v755 = vmax.f32 %v692, 0.0
      %v756 = vmax.f32 %v695, 0.0
      %v757 = vmax.f32 %v698, 0.0
      %v758 = vmax.f32 %v701, 0.0
      %v759 = vmax.f32 %v704, 0.0
      %v760 = vmax.f32 %v707, 0.0
      %v761 = vmax.f32 %v710, 0.0
      %v762 = vmax.f32 %v713, 0.0
      %v763 = vmax.f32 %v716, 0.0
      %v764 = vmax.f32 %v719, 0.0
      %v765 = vmax.f32 %v722, 0.0
      %v766 = vmax.f32 %v725, 0.0
      %v767 = vmax.f32 %v728, 0.0
      %v768 = vmax.f32 %v731, 0.0
      %v769 = vmax.f32 %v734, 0.0
      %v770 = vmax.f32 %v737, 0.0
      %v771 = vld [vmem:[%s3] sm:$0xff]
      %v772 = vld [vmem:[%s3 + $0x8] sm:$0xff]
      %v773 = vld [vmem:[%s3 + $0x10] sm:$0xff]
      %v774 = vld [vmem:[%s3 + $0x18] sm:$0xff]
      %v775 = vld [vmem:[%s3 + $0x20] sm:$0xff]
      %v776 = vld [vmem:[%s3 + $0x28] sm:$0xff]
      %v777 = vld [vmem:[%s3 + $0x30] sm:$0xff]
      %v778 = vld [vmem:[%s3 + $0x38] sm:$0xff]
      %v779 = vld [vmem:[%s3 + $0x40] sm:$0xff]
      %v780 = vld [vmem:[%s3 + $0x48] sm:$0xff]
      %v781 = vld [vmem:[%s3 + $0x50] sm:$0xff]
      %v782 = vld [vmem:[%s3 + $0x58] sm:$0xff]
      %v783 = vld [vmem:[%s3 + $0x60] sm:$0xff]
      %v784 = vld [vmem:[%s3 + $0x68] sm:$0xff]
      %v785 = vld [vmem:[%s3 + $0x70] sm:$0xff]
      %v786 = vld [vmem:[%s3 + $0x78] sm:$0xff]
      %v787 = vld [vmem:[%s3 + $0x80] sm:$0xff]
      %v788 = vld [vmem:[%s3 + $0x88] sm:$0xff]
      %v789 = vld [vmem:[%s3 + $0x90] sm:$0xff]
      %v790 = vld [vmem:[%s3 + $0x98] sm:$0xff]
      %v791 = vld [vmem:[%s3 + $0xa0] sm:$0xff]
      %v792 = vld [vmem:[%s3 + $0xa8] sm:$0xff]
      %v793 = vld [vmem:[%s3 + $0xb0] sm:$0xff]
      %v794 = vld [vmem:[%s3 + $0xb8] sm:$0xff]
      %v795 = vld [vmem:[%s3 + $0xc0] sm:$0xff]
      %v796 = vld [vmem:[%s3 + $0xc8] sm:$0xff]
      %v797 = vld [vmem:[%s3 + $0xd0] sm:$0xff]
      %v798 = vld [vmem:[%s3 + $0xd8] sm:$0xff]
      %v799 = vld [vmem:[%s3 + $0xe0] sm:$0xff]
      %v800 = vld [vmem:[%s3 + $0xe8] sm:$0xff]
      %v801 = vld [vmem:[%s3 + $0xf0] sm:$0xff]
      %v802 = vld [vmem:[%s3 + $0xf8] sm:$0xff]
      %v803 = vld [vmem:[%s3 + $0x100] sm:$0xff]
      %v804 = vld [vmem:[%s3 + $0x108] sm:$0xff]
      %v805 = vld [vmem:[%s3 + $0x110] sm:$0xff]
      %v806 = vld [vmem:[%s3 + $0x118] sm:$0xff]
      %v807 = vld [vmem:[%s3 + $0x120] sm:$0xff]
      %v808 = vld [vmem:[%s3 + $0x128] sm:$0xff]
      %v809 = vld [vmem:[%s3 + $0x130] sm:$0xff]
      %v810 = vld [vmem:[%s3 + $0x138] sm:$0xff]
      %v811 = vld [vmem:[%s3 + $0x140] sm:$0xff]
      %v812 = vld [vmem:[%s3 + $0x148] sm:$0xff]
      %v813 = vld [vmem:[%s3 + $0x150] sm:$0xff]
      %v814 = vld [vmem:[%s3 + $0x158] sm:$0xff]
      %v815 = vld [vmem:[%s3 + $0x160] sm:$0xff]
      %v816 = vld [vmem:[%s3 + $0x168] sm:$0xff]
      %v817 = vld [vmem:[%s3 + $0x170] sm:$0xff]
      %v818 = vld [vmem:[%s3 + $0x178] sm:$0xff]
      %v819 = vld [vmem:[%s3 + $0x180] sm:$0xff]
      %v820 = vld [vmem:[%s3 + $0x188] sm:$0xff]
      %v821 = vld [vmem:[%s3 + $0x190] sm:$0xff]
      %v822 = vld [vmem:[%s3 + $0x198] sm:$0xff]
      %v823 = vld [vmem:[%s3 + $0x1a0] sm:$0xff]
      %v824 = vld [vmem:[%s3 + $0x1a8] sm:$0xff]
      %v825 = vld [vmem:[%s3 + $0x1b0] sm:$0xff]
      %v826 = vld [vmem:[%s3 + $0x1b8] sm:$0xff]
      %v827 = vld [vmem:[%s3 + $0x1c0] sm:$0xff]
      %v828 = vld [vmem:[%s3 + $0x1c8] sm:$0xff]
      %v829 = vld [vmem:[%s3 + $0x1d0] sm:$0xff]
      %v830 = vld [vmem:[%s3 + $0x1d8] sm:$0xff]
      %v831 = vld [vmem:[%s3 + $0x1e0] sm:$0xff]
      %v832 = vld [vmem:[%s3 + $0x1e8] sm:$0xff]
      %v833 = vld [vmem:[%s3 + $0x1f0] sm:$0xff]
      %v834 = vld [vmem:[%s3 + $0x1f8] sm:$0xff]
      %v835 = vld [vmem:[%s4] sm:$0xff]
      %v836 = vld [vmem:[%s4 + $0x8] sm:$0xff]
      %v837 = vld [vmem:[%s4 + $0x10] sm:$0xff]
      %v838 = vld [vmem:[%s4 + $0x18] sm:$0xff]
      %v839 = vld [vmem:[%s4 + $0x20] sm:$0xff]
      %v840 = vld [vmem:[%s4 + $0x28] sm:$0xff]
      %v841 = vld [vmem:[%s4 + $0x30] sm:$0xff]
      %v842 = vld [vmem:[%s4 + $0x38] sm:$0xff]
      %v843 = vld [vmem:[%s4 + $0x40] sm:$0xff]
      %v844 = vld [vmem:[%s4 + $0x48] sm:$0xff]
      %v845 = vld [vmem:[%s4 + $0x50] sm:$0xff]
      %v846 = vld [vmem:[%s4 + $0x58] sm:$0xff]
      %v847 = vld [vmem:[%s4 + $0x60] sm:$0xff]
      %v848 = vld [vmem:[%s4 + $0x68] sm:$0xff]
      %v849 = vld [vmem:[%s4 + $0x70] sm:$0xff]
      %v850 = vld [vmem:[%s4 + $0x78] sm:$0xff]
      %v851 = vld [vmem:[%s4 + $0x80] sm:$0xff]
      %v852 = vld [vmem:[%s4 + $0x88] sm:$0xff]
      %v853 = vld [vmem:[%s4 + $0x90] sm:$0xff]
      %v854 = vld [vmem:[%s4 + $0x98] sm:$0xff]
      %v855 = vld [vmem:[%s4 + $0xa0] sm:$0xff]
      %v856 = vld [vmem:[%s4 + $0xa8] sm:$0xff]
      %v857 = vld [vmem:[%s4 + $0xb0] sm:$0xff]
      %v858 = vld [vmem:[%s4 + $0xb8] sm:$0xff]
      %v859 = vld [vmem:[%s4 + $0xc0] sm:$0xff]
      %v860 = vld [vmem:[%s4 + $0xc8] sm:$0xff]
      %v861 = vld [vmem:[%s4 + $0xd0] sm:$0xff]
      %v862 = vld [vmem:[%s4 + $0xd8] sm:$0xff]
      %v863 = vld [vmem:[%s4 + $0xe0] sm:$0xff]
      %v864 = vld [vmem:[%s4 + $0xe8] sm:$0xff]
      %v865 = vld [vmem:[%s4 + $0xf0] sm:$0xff]
      %v866 = vld [vmem:[%s4 + $0xf8] sm:$0xff]
      %868 = vset.pattern.permute.xlu0 0
      %869 = vperm.xlu0 %868, %v835
      %v870 = vpop.permute.xlu0 %869
      %873 = vset.pattern.permute.xlu0 0
      %874 = vperm.xlu0 %873, %v836
      %v875 = vpop.permute.xlu0 %874
      %878 = vset.pattern.permute.xlu0 0
      %879 = vperm.xlu0 %878, %v837
      %v880 = vpop.permute.xlu0 %879
      %883 = vset.pattern.permute.xlu0 0
      %884 = vperm.xlu0 %883, %v838
      %v885 = vpop.permute.xlu0 %884
      %888 = vset.pattern.permute.xlu0 0
      %889 = vperm.xlu0 %888, %v839
      %v890 = vpop.permute.xlu0 %889
      %893 = vset.pattern.permute.xlu0 0
      %894 = vperm.xlu0 %893, %v840
      %v895 = vpop.permute.xlu0 %894
      %898 = vset.pattern.permute.xlu0 0
      %899 = vperm.xlu0 %898, %v841
      %v900 = vpop.permute.xlu0 %899
      %903 = vset.pattern.permute.xlu0 0
      %904 = vperm.xlu0 %903, %v842
      %v905 = vpop.permute.xlu0 %904
      %908 = vset.pattern.permute.xlu0 0
      %909 = vperm.xlu0 %908, %v843
      %v910 = vpop.permute.xlu0 %909
      %913 = vset.pattern.permute.xlu0 0
      %914 = vperm.xlu0 %913, %v844
      %v915 = vpop.permute.xlu0 %914
      %918 = vset.pattern.permute.xlu0 0
      %919 = vperm.xlu0 %918, %v845
      %v920 = vpop.permute.xlu0 %919
      %923 = vset.pattern.permute.xlu0 0
      %924 = vperm.xlu0 %923, %v846
      %v925 = vpop.permute.xlu0 %924
      %928 = vset.pattern.permute.xlu0 0
      %929 = vperm.xlu0 %928, %v847
      %v930 = vpop.permute.xlu0 %929
      %933 = vset.pattern.permute.xlu0 0
      %934 = vperm.xlu0 %933, %v848
      %v935 = vpop.permute.xlu0 %934
      %938 = vset.pattern.permute.xlu0 0
      %939 = vperm.xlu0 %938, %v849
      %v940 = vpop.permute.xlu0 %939
      %943 = vset.pattern.permute.xlu0 0
      %944 = vperm.xlu0 %943, %v850
      %v945 = vpop.permute.xlu0 %944
      %948 = vset.pattern.permute.xlu0 0
      %949 = vperm.xlu0 %948, %v851
      %v950 = vpop.permute.xlu0 %949
      %953 = vset.pattern.permute.xlu0 0
      %954 = vperm.xlu0 %953, %v852
      %v955 = vpop.permute.xlu0 %954
      %958 = vset.pattern.permute.xlu0 0
      %959 = vperm.xlu0 %958, %v853
      %v960 = vpop.permute.xlu0 %959
      %963 = vset.pattern.permute.xlu0 0
      %964 = vperm.xlu0 %963, %v854
      %v965 = vpop.permute.xlu0 %964
      %968 = vset.pattern.permute.xlu0 0
      %969 = vperm.xlu0 %968, %v855
      %v970 = vpop.permute.xlu0 %969
      %973 = vset.pattern.permute.xlu0 0
      %974 = vperm.xlu0 %973, %v856
      %v975 = vpop.permute.xlu0 %974
      %978 = vset.pattern.permute.xlu0 0
      %979 = vperm.xlu0 %978, %v857
      %v980 = vpop.permute.xlu0 %979
      %983 = vset.pattern.permute.xlu0 0
      %984 = vperm.xlu0 %983, %v858
      %v985 = vpop.permute.xlu0 %984
      %988 = vset.pattern.permute.xlu0 0
      %989 = vperm.xlu0 %988, %v859
      %v990 = vpop.permute.xlu0 %989
      %993 = vset.pattern.permute.xlu0 0
      %994 = vperm.xlu0 %993, %v860
      %v995 = vpop.permute.xlu0 %994
      %998 = vset.pattern.permute.xlu0 0
      %999 = vperm.xlu0 %998, %v861
      %v1000 = vpop.permute.xlu0 %999
      %1003 = vset.pattern.permute.xlu0 0
      %1004 = vperm.xlu0 %1003, %v862
      %v1005 = vpop.permute.xlu0 %1004
      %1008 = vset.pattern.permute.xlu0 0
      %1009 = vperm.xlu0 %1008, %v863
      %v1010 = vpop.permute.xlu0 %1009
      %1013 = vset.pattern.permute.xlu0 0
      %1014 = vperm.xlu0 %1013, %v864
      %v1015 = vpop.permute.xlu0 %1014
      %1018 = vset.pattern.permute.xlu0 0
      %1019 = vperm.xlu0 %1018, %v865
      %v1020 = vpop.permute.xlu0 %1019
      %1023 = vset.pattern.permute.xlu0 0
      %1024 = vperm.xlu0 %1023, %v866
      %v1025 = vpop.permute.xlu0 %1024
      %1027 = vmatpush.msra.mxu0 %v754
      %1028 = vmatpush.msra.mxu0 %v753
      %1029 = vmatpush.msra.mxu0 %v752
      %1030 = vmatpush.msra.mxu0 %v751
      %1031 = vmatpush.msra.mxu0 %v750
      %1032 = vmatpush.msra.mxu0 %v749
      %1033 = vmatpush.msra.mxu0 %v748
      %1034 = vmatpush.msra.mxu0 %v747
      %1035 = vmatpush.msra.mxu0 %v746
      %1036 = vmatpush.msra.mxu0 %v745
      %1037 = vmatpush.msra.mxu0 %v744
      %1038 = vmatpush.msra.mxu0 %v743
      %1039 = vmatpush.msra.mxu0 %v742
      %1040 = vmatpush.msra.mxu0 %v741
      %1041 = vmatpush.msra.mxu0 %v740
      %1042 = vmatpush.msra.mxu0 %v739
      %1043 = vmatmul.f32.gmra.mxu0 %v771
      %v1044 = vpop.f32.mrf.mxu0
      %v1045 = vadd.f32 %v870, %v1044
      %1046 = vmatmul.f32.gmra.mxu0 %v773
      %v1047 = vpop.f32.mrf.mxu0
      %v1048 = vadd.f32 %v875, %v1047
      %1049 = vmatmul.f32.gmra.mxu0 %v775
      %v1050 = vpop.f32.mrf.mxu0
      %v1051 = vadd.f32 %v880, %v1050
      %1052 = vmatmul.f32.gmra.mxu0 %v777
      %v1053 = vpop.f32.mrf.mxu0
      %v1054 = vadd.f32 %v885, %v1053
      %1055 = vmatmul.f32.gmra.mxu0 %v779
      %v1056 = vpop.f32.mrf.mxu0
      %v1057 = vadd.f32 %v890, %v1056
      %1058 = vmatmul.f32.gmra.mxu0 %v781
      %v1059 = vpop.f32.mrf.mxu0
      %v1060 = vadd.f32 %v895, %v1059
      %1061 = vmatmul.f32.gmra.mxu0 %v783
      %v1062 = vpop.f32.mrf.mxu0
      %v1063 = vadd.f32 %v900, %v1062
      %1064 = vmatmul.f32.gmra.mxu0 %v785
      %v1065 = vpop.f32.mrf.mxu0
      %v1066 = vadd.f32 %v905, %v1065
      %1067 = vmatmul.f32.gmra.mxu0 %v787
      %v1068 = vpop.f32.mrf.mxu0
      %v1069 = vadd.f32 %v910, %v1068
      %1070 = vmatmul.f32.gmra.mxu0 %v789
      %v1071 = vpop.f32.mrf.mxu0
      %v1072 = vadd.f32 %v915, %v1071
      %1073 = vmatmul.f32.gmra.mxu0 %v791
      %v1074 = vpop.f32.mrf.mxu0
      %v1075 = vadd.f32 %v920, %v1074
      %1076 = vmatmul.f32.gmra.mxu0 %v793
      %v1077 = vpop.f32.mrf.mxu0
      %v1078 = vadd.f32 %v925, %v1077
      %1079 = vmatmul.f32.gmra.mxu0 %v795
      %v1080 = vpop.f32.mrf.mxu0
      %v1081 = vadd.f32 %v930, %v1080
      %1082 = vmatmul.f32.gmra.mxu0 %v797
      %v1083 = vpop.f32.mrf.mxu0
      %v1084 = vadd.f32 %v935, %v1083
      %1085 = vmatmul.f32.gmra.mxu0 %v799
      %v1086 = vpop.f32.mrf.mxu0
      %v1087 = vadd.f32 %v940, %v1086
      %1088 = vmatmul.f32.gmra.mxu0 %v801
      %v1089 = vpop.f32.mrf.mxu0
      %v1090 = vadd.f32 %v945, %v1089
      %1091 = vmatmul.f32.gmra.mxu0 %v803
      %v1092 = vpop.f32.mrf.mxu0
      %v1093 = vadd.f32 %v950, %v1092
      %1094 = vmatmul.f32.gmra.mxu0 %v805
      %v1095 = vpop.f32.mrf.mxu0
      %v1096 = vadd.f32 %v955, %v1095
      %1097 = vmatmul.f32.gmra.mxu0 %v807
      %v1098 = vpop.f32.mrf.mxu0
      %v1099 = vadd.f32 %v960, %v1098
      %1100 = vmatmul.f32.gmra.mxu0 %v809
      %v1101 = vpop.f32.mrf.mxu0
      %v1102 = vadd.f32 %v965, %v1101
      %1103 = vmatmul.f32.gmra.mxu0 %v811
      %v1104 = vpop.f32.mrf.mxu0
      %v1105 = vadd.f32 %v970, %v1104
      %1106 = vmatmul.f32.gmra.mxu0 %v813
      %v1107 = vpop.f32.mrf.mxu0
      %v1108 = vadd.f32 %v975, %v1107
      %1109 = vmatmul.f32.gmra.mxu0 %v815
      %v1110 = vpop.f32.mrf.mxu0
      %v1111 = vadd.f32 %v980, %v1110
      %1112 = vmatmul.f32.gmra.mxu0 %v817
      %v1113 = vpop.f32.mrf.mxu0
      %v1114 = vadd.f32 %v985, %v1113
      %1115 = vmatmul.f32.gmra.mxu0 %v819
      %v1116 = vpop.f32.mrf.mxu0
      %v1117 = vadd.f32 %v990, %v1116
      %1118 = vmatmul.f32.gmra.mxu0 %v821
      %v1119 = vpop.f32.mrf.mxu0
      %v1120 = vadd.f32 %v995, %v1119
      %1121 = vmatmul.f32.gmra.mxu0 %v823
      %v1122 = vpop.f32.mrf.mxu0
      %v1123 = vadd.f32 %v1000, %v1122
      %1124 = vmatmul.f32.gmra.mxu0 %v825
      %v1125 = vpop.f32.mrf.mxu0
      %v1126 = vadd.f32 %v1005, %v1125
      %1127 = vmatmul.f32.gmra.mxu0 %v827
      %v1128 = vpop.f32.mrf.mxu0
      %v1129 = vadd.f32 %v1010, %v1128
      %1130 = vmatmul.f32.gmra.mxu0 %v829
      %v1131 = vpop.f32.mrf.mxu0
      %v1132 = vadd.f32 %v1015, %v1131
      %1133 = vmatmul.f32.gmra.mxu0 %v831
      %v1134 = vpop.f32.mrf.mxu0
      %v1135 = vadd.f32 %v1020, %v1134
      %1136 = vmatmul.f32.gmra.mxu0 %v833
      %v1137 = vpop.f32.mrf.mxu0
      %v1138 = vadd.f32 %v1025, %v1137
      %1139 = vdwg.mxu0
      %1140 = vmatpush.msra.mxu0 %v770
      %1141 = vmatpush.msra.mxu0 %v769
      %1142 = vmatpush.msra.mxu0 %v768
      %1143 = vmatpush.msra.mxu0 %v767
      %1144 = vmatpush.msra.mxu0 %v766
      %1145 = vmatpush.msra.mxu0 %v765
      %1146 = vmatpush.msra.mxu0 %v764
      %1147 = vmatpush.msra.mxu0 %v763
      %1148 = vmatpush.msra.mxu0 %v762
      %1149 = vmatpush.msra.mxu0 %v761
      %1150 = vmatpush.msra.mxu0 %v760
      %1151 = vmatpush.msra.mxu0 %v759
      %1152 = vmatpush.msra.mxu0 %v758
      %1153 = vmatpush.msra.mxu0 %v757
      %1154 = vmatpush.msra.mxu0 %v756
      %1155 = vmatpush.msra.mxu0 %v755
      %1156 = vmatmul.f32.gmra.mxu0 %v772
      %v1157 = vpop.f32.mrf.mxu0
      %v1158 = vadd.f32 %v1045, %v1157
      %1159 = vmatmul.f32.gmra.mxu0 %v774
      %v1160 = vpop.f32.mrf.mxu0
      %v1161 = vadd.f32 %v1048, %v1160
      %1162 = vmatmul.f32.gmra.mxu0 %v776
      %v1163 = vpop.f32.mrf.mxu0
      %v1164 = vadd.f32 %v1051, %v1163
      %1165 = vmatmul.f32.gmra.mxu0 %v778
      %v1166 = vpop.f32.mrf.mxu0
      %v1167 = vadd.f32 %v1054, %v1166
      %1168 = vmatmul.f32.gmra.mxu0 %v780
      %v1169 = vpop.f32.mrf.mxu0
      %v1170 = vadd.f32 %v1057, %v1169
      %1171 = vmatmul.f32.gmra.mxu0 %v782
      %v1172 = vpop.f32.mrf.mxu0
      %v1173 = vadd.f32 %v1060, %v1172
      %1174 = vmatmul.f32.gmra.mxu0 %v784
      %v1175 = vpop.f32.mrf.mxu0
      %v1176 = vadd.f32 %v1063, %v1175
      %1177 = vmatmul.f32.gmra.mxu0 %v786
      %v1178 = vpop.f32.mrf.mxu0
      %v1179 = vadd.f32 %v1066, %v1178
      %1180 = vmatmul.f32.gmra.mxu0 %v788
      %v1181 = vpop.f32.mrf.mxu0
      %v1182 = vadd.f32 %v1069, %v1181
      %1183 = vmatmul.f32.gmra.mxu0 %v790
      %v1184 = vpop.f32.mrf.mxu0
      %v1185 = vadd.f32 %v1072, %v1184
      %1186 = vmatmul.f32.gmra.mxu0 %v792
      %v1187 = vpop.f32.mrf.mxu0
      %v1188 = vadd.f32 %v1075, %v1187
      %1189 = vmatmul.f32.gmra.mxu0 %v794
      %v1190 = vpop.f32.mrf.mxu0
      %v1191 = vadd.f32 %v1078, %v1190
      %1192 = vmatmul.f32.gmra.mxu0 %v796
      %v1193 = vpop.f32.mrf.mxu0
      %v1194 = vadd.f32 %v1081, %v1193
      %1195 = vmatmul.f32.gmra.mxu0 %v798
      %v1196 = vpop.f32.mrf.mxu0
      %v1197 = vadd.f32 %v1084, %v1196
      %1198 = vmatmul.f32.gmra.mxu0 %v800
      %v1199 = vpop.f32.mrf.mxu0
      %v1200 = vadd.f32 %v1087, %v1199
      %1201 = vmatmul.f32.gmra.mxu0 %v802
      %v1202 = vpop.f32.mrf.mxu0
      %v1203 = vadd.f32 %v1090, %v1202
      %1204 = vmatmul.f32.gmra.mxu0 %v804
      %v1205 = vpop.f32.mrf.mxu0
      %v1206 = vadd.f32 %v1093, %v1205
      %1207 = vmatmul.f32.gmra.mxu0 %v806
      %v1208 = vpop.f32.mrf.mxu0
      %v1209 = vadd.f32 %v1096, %v1208
      %1210 = vmatmul.f32.gmra.mxu0 %v808
      %v1211 = vpop.f32.mrf.mxu0
      %v1212 = vadd.f32 %v1099, %v1211
      %1213 = vmatmul.f32.gmra.mxu0 %v810
      %v1214 = vpop.f32.mrf.mxu0
      %v1215 = vadd.f32 %v1102, %v1214
      %1216 = vmatmul.f32.gmra.mxu0 %v812
      %v1217 = vpop.f32.mrf.mxu0
      %v1218 = vadd.f32 %v1105, %v1217
      %1219 = vmatmul.f32.gmra.mxu0 %v814
      %v1220 = vpop.f32.mrf.mxu0
      %v1221 = vadd.f32 %v1108, %v1220
      %1222 = vmatmul.f32.gmra.mxu0 %v816
      %v1223 = vpop.f32.mrf.mxu0
      %v1224 = vadd.f32 %v1111, %v1223
      %1225 = vmatmul.f32.gmra.mxu0 %v818
      %v1226 = vpop.f32.mrf.mxu0
      %v1227 = vadd.f32 %v1114, %v1226
      %1228 = vmatmul.f32.gmra.mxu0 %v820
      %v1229 = vpop.f32.mrf.mxu0
      %v1230 = vadd.f32 %v1117, %v1229
      %1231 = vmatmul.f32.gmra.mxu0 %v822
      %v1232 = vpop.f32.mrf.mxu0
      %v1233 = vadd.f32 %v1120, %v1232
      %1234 = vmatmul.f32.gmra.mxu0 %v824
      %v1235 = vpop.f32.mrf.mxu0
      %v1236 = vadd.f32 %v1123, %v1235
      %1237 = vmatmul.f32.gmra.mxu0 %v826
      %v1238 = vpop.f32.mrf.mxu0
      %v1239 = vadd.f32 %v1126, %v1238
      %1240 = vmatmul.f32.gmra.mxu0 %v828
      %v1241 = vpop.f32.mrf.mxu0
      %v1242 = vadd.f32 %v1129, %v1241
      %1243 = vmatmul.f32.gmra.mxu0 %v830
      %v1244 = vpop.f32.mrf.mxu0
      %v1245 = vadd.f32 %v1132, %v1244
      %1246 = vmatmul.f32.gmra.mxu0 %v832
      %v1247 = vpop.f32.mrf.mxu0
      %v1248 = vadd.f32 %v1135, %v1247
      %1249 = vmatmul.f32.gmra.mxu0 %v834
      %v1250 = vpop.f32.mrf.mxu0
      %v1251 = vadd.f32 %v1138, %v1250
      %1252 = vdwg.mxu0
      %v1253 = vmax.f32 %v1158, 0.0
      %v1254 = vmax.f32 %v1161, 0.0
      %v1255 = vmax.f32 %v1164, 0.0
      %v1256 = vmax.f32 %v1167, 0.0
      %v1257 = vmax.f32 %v1170, 0.0
      %v1258 = vmax.f32 %v1173, 0.0
      %v1259 = vmax.f32 %v1176, 0.0
      %v1260 = vmax.f32 %v1179, 0.0
      %v1261 = vmax.f32 %v1182, 0.0
      %v1262 = vmax.f32 %v1185, 0.0
      %v1263 = vmax.f32 %v1188, 0.0
      %v1264 = vmax.f32 %v1191, 0.0
      %v1265 = vmax.f32 %v1194, 0.0
      %v1266 = vmax.f32 %v1197, 0.0
      %v1267 = vmax.f32 %v1200, 0.0
      %v1268 = vmax.f32 %v1203, 0.0
      %v1269 = vmax.f32 %v1206, 0.0
      %v1270 = vmax.f32 %v1209, 0.0
      %v1271 = vmax.f32 %v1212, 0.0
      %v1272 = vmax.f32 %v1215, 0.0
      %v1273 = vmax.f32 %v1218, 0.0
      %v1274 = vmax.f32 %v1221, 0.0
      %v1275 = vmax.f32 %v1224, 0.0
      %v1276 = vmax.f32 %v1227, 0.0
      %v1277 = vmax.f32 %v1230, 0.0
      %v1278 = vmax.f32 %v1233, 0.0
      %v1279 = vmax.f32 %v1236, 0.0
      %v1280 = vmax.f32 %v1239, 0.0
      %v1281 = vmax.f32 %v1242, 0.0
      %v1282 = vmax.f32 %v1245, 0.0
      %v1283 = vmax.f32 %v1248, 0.0
      %v1284 = vmax.f32 %v1251, 0.0
      %vm1285 = vcmask 400384
      %1286 = vst.msk [vmem:[%s224] sm:$0xff] %vm1285, %v1253
      %1287 = vst.msk [vmem:[%s224 + $0x8] sm:$0xff] %vm1285, %v1254
      %1288 = vst.msk [vmem:[%s224 + $0x10] sm:$0xff] %vm1285, %v1255
      %1289 = vst.msk [vmem:[%s224 + $0x18] sm:$0xff] %vm1285, %v1256
      %1290 = vst.msk [vmem:[%s224 + $0x20] sm:$0xff] %vm1285, %v1257
      %1291 = vst.msk [vmem:[%s224 + $0x28] sm:$0xff] %vm1285, %v1258
      %1292 = vst.msk [vmem:[%s224 + $0x30] sm:$0xff] %vm1285, %v1259
      %1293 = vst.msk [vmem:[%s224 + $0x38] sm:$0xff] %vm1285, %v1260
      %1294 = vst.msk [vmem:[%s224 + $0x40] sm:$0xff] %vm1285, %v1261
      %1295 = vst.msk [vmem:[%s224 + $0x48] sm:$0xff] %vm1285, %v1262
      %1296 = vst.msk [vmem:[%s224 + $0x50] sm:$0xff] %vm1285, %v1263
      %1297 = vst.msk [vmem:[%s224 + $0x58] sm:$0xff] %vm1285, %v1264
      %1298 = vst.msk [vmem:[%s224 + $0x60] sm:$0xff] %vm1285, %v1265
      %1299 = vst.msk [vmem:[%s224 + $0x68] sm:$0xff] %vm1285, %v1266
      %1300 = vst.msk [vmem:[%s224 + $0x70] sm:$0xff] %vm1285, %v1267
      %1301 = vst.msk [vmem:[%s224 + $0x78] sm:$0xff] %vm1285, %v1268
      %1302 = vst.msk [vmem:[%s224 + $0x80] sm:$0xff] %vm1285, %v1269
      %1303 = vst.msk [vmem:[%s224 + $0x88] sm:$0xff] %vm1285, %v1270
      %1304 = vst.msk [vmem:[%s224 + $0x90] sm:$0xff] %vm1285, %v1271
      %1305 = vst.msk [vmem:[%s224 + $0x98] sm:$0xff] %vm1285, %v1272
      %1306 = vst.msk [vmem:[%s224 + $0xa0] sm:$0xff] %vm1285, %v1273
      %1307 = vst.msk [vmem:[%s224 + $0xa8] sm:$0xff] %vm1285, %v1274
      %1308 = vst.msk [vmem:[%s224 + $0xb0] sm:$0xff] %vm1285, %v1275
      %1309 = vst.msk [vmem:[%s224 + $0xb8] sm:$0xff] %vm1285, %v1276
      %1310 = vst.msk [vmem:[%s224 + $0xc0] sm:$0xff] %vm1285, %v1277
      %1311 = vst.msk [vmem:[%s224 + $0xc8] sm:$0xff] %vm1285, %v1278
      %1312 = vst.msk [vmem:[%s224 + $0xd0] sm:$0xff] %vm1285, %v1279
      %1313 = vst.msk [vmem:[%s224 + $0xd8] sm:$0xff] %vm1285, %v1280
      %1314 = vst.msk [vmem:[%s224 + $0xe0] sm:$0xff] %vm1285, %v1281
      %1315 = vst.msk [vmem:[%s224 + $0xe8] sm:$0xff] %vm1285, %v1282
      %1316 = vst.msk [vmem:[%s224 + $0xf0] sm:$0xff] %vm1285, %v1283
      %1317 = vst.msk [vmem:[%s224 + $0xf8] sm:$0xff] %vm1285, %v1284
      %p1318 = scmp.lt.s32.totalorder %s16, 1
      %s1319 = scalar_select %p1318, %s16, 1
      %s1320 = smul.addr %s1319, 32
      %s1321 = smul.addr %s1320, 8
      %s1322 = scalar_lea.vmem %s5, %s1321
      // Predicated region
      $region41: #{tpu_custom_call.1} parent=39 // pred_check
        %p1323 = pneg %p144
      $region42: #{tpu_custom_call.1} parent=39 // pred_check_branch
        %1325 = sbr.rel (%p1323) target = $region44
      $region43: #{tpu_custom_call.1} parent=39 // pred_region
        _
      $region44: #{tpu_custom_call.1} parent=39 // pred_fallthru
        _
    $region40: #{tpu_custom_call.1} parent=5 // pred_fallthru
      _
    %p1326 = scmp.le.s32.totalorder 2, %s11
    // Predicated region
    $region45: #{tpu_custom_call.1} parent=5 // pred_check
      %p1327 = pneg %p1326
    $region46: #{tpu_custom_call.1} parent=5 // pred_check_branch
      %1329 = sbr.rel (%p1327) target = $region48
    $region47: #{tpu_custom_call.1} parent=5 // pred_region
      %s1330 = ssub.s32 %s11, 2
      // Predicated region
      $region49: #{tpu_custom_call.1} parent=47 // pred_check
        %p1331 = pneg %p150
      $region50: #{tpu_custom_call.1} parent=47 // pred_check_branch
        %1333 = sbr.rel (%p1331) target = $region52
      $region51: #{tpu_custom_call.1} parent=47 // pred_region
        %p1334 = scmp.lt.s32.totalorder %s17, 1
        %s1335 = scalar_select %p1334, %s17, 1
        %s1336 = smul.addr %s1335, 32
        %s1337 = smul.addr %s1336, 8
        %s1338 = scalar_lea.vmem %s5, %s1337
      $region52: #{tpu_custom_call.1} parent=47 // pred_fallthru
        _
    $region48: #{tpu_custom_call.1} parent=5 // pred_fallthru
      _
  $region6: #{tpu_custom_call.1} parent=0 // loop_footer
    %s15 = sadd.s32 1, %s11
  $region7: #{tpu_custom_call.1} parent=0 // loop_footer_branch
    %10 = sbr.rel target = $region3
  $region8: #{tpu_custom_call.1} parent=0 // loop_exit
    _

</llo_original>
